<compile_context>
chip_gen: v6e
topology: v6e:2x2x1
jax: 0.10.0
libtpu: 0.0.40
codegen_flags: <defaults>
</compile_context>

<pallas_src>
import functools

import jax
import jax.numpy as jnp
from jax.experimental import pallas as pl
from jax.experimental.pallas import tpu as pltpu

LANE = 128


def _ce_dice_kernel(logits_ref, labels_ref, out_ref, *,
                    hw, rows, c, inner_tiles, acc_rows):
    """One grid step over a (C, rows, 128) logits block and (rows, 128) labels."""
    t = pl.program_id(2)

    @pl.when(t == 0)
    def _():
        out_ref[...] = jnp.zeros_like(out_ref)

    # Global row-block index (chunk-major) and flat-pixel validity mask for the
    # ragged tail (covers both wrapper zero-pad and Pallas OOB rows).
    g = pl.program_id(1) * inner_tiles + t
    row = jax.lax.broadcasted_iota(jnp.int32, (rows, LANE), 0)
    lane = jax.lax.broadcasted_iota(jnp.int32, (rows, LANE), 1)
    flat = (g * rows + row) * LANE + lane
    valid = flat < hw
    validf = valid.astype(jnp.float32)

    # Per-channel logits as lane-dense (rows, 128) vregs; zero garbage columns
    # BEFORE max/exp so everything downstream stays finite.
    xs = [jnp.where(valid, logits_ref[i, :, :].astype(jnp.float32), 0.0)
          for i in range(c)]

    # Channel max / exp / sum as unrolled elementwise chains (VPU/EUP only,
    # no cross-sublane XLU reductions).
    m = xs[0]
    for i in range(1, c):
        m = jnp.maximum(m, xs[i])
    es = [jnp.exp(xs[i] - m) for i in range(c)]
    s = es[0]
    for i in range(1, c):
        s = s + es[i]
    lse = jnp.log(s) + m

    # EUP approx reciprocal + one Newton-Raphson step (~f32 accurate).
    inv_s = pl.reciprocal(s, approx=True)
    inv_s = inv_s * (2.0 - s * inv_s)

    labels = labels_ref[...].astype(jnp.int32)

    # Target-logit gather; labels assumed in [0, C-1] (no ignore_index).
    logit_t = jnp.where(labels == 0, xs[0], 0.0)
    for i in range(1, c):
        logit_t = logit_t + jnp.where(labels == i, xs[i], 0.0)

    ce = (lse - logit_t) * validf            # per-pixel cross-entropy
    p1 = es[1] * inv_s * validf              # softmax prob of channel 1
    lab = labels.astype(jnp.float32) * validf

    # Fold (rows, 128) -> (acc_rows, 128) with vreg-wise adds only; the final
    # cross-lane/sublane reduction happens once, in the wrapper.
    def fold(x):
        if rows == acc_rows:
            return x
        return jnp.sum(x.reshape(rows // acc_rows, acc_rows, LANE), axis=0)

    out_ref[0, :, :] = out_ref[0, :, :] + fold(ce)
    out_ref[1, :, :] = out_ref[1, :, :] + fold(p1 * lab)
    out_ref[2, :, :] = out_ref[2, :, :] + fold(p1)
    out_ref[3, :, :] = out_ref[3, :, :] + fold(lab)
    # TODO(synk): if EUP becomes the binding slot on v7x, consider bf16 exp/log
    # (supported on v6e/v7x EUP, not v5e) with f32 accumulation.


def _vmem_capacity_bytes():
    try:
        return int(pltpu.get_tpu_info().vmem_capacity_bytes)
    except Exception:
        return 128 * 1024 * 1024


def _pick_rows(c, r_total, logits_itemsize, labels_itemsize):
    """Rows-of-128-pixels per block, from a generation-aware VMEM budget.

    The budget covers the double-buffered input blocks plus the ~(2C+10)
    live (rows, 128) f32 intermediates the kernel keeps in flight.
    """
    vmem = _vmem_capacity_bytes()
    if vmem <= 64 * 1024 * 1024:          # v7x-class TensorCore (64 MiB VMEM)
        budget = 24 * 1024 * 1024
    else:                                  # v5e / v6e (128 MiB VMEM)
        budget = 48 * 1024 * 1024
    per_row = LANE * (2 * (c * logits_itemsize + labels_itemsize)   # 2x pipeline bufs
                      + 4 * (2 * c + 10))                           # f32 temporaries
    max_rows = max(8, budget // per_row)
    if r_total <= max_rows:
        return r_total                     # full-extent block (always legal)
    return max(8, (max_rows // 8) * 8)     # sublane-aligned tile


@jax.jit
def ce_dice_loss(pmask, rmask):
    """pmask: (N, C, H, W) raw logits. rmask: (N, H, W) int labels in [0, C-1]."""
    N, C, H, W = pmask.shape
    assert C >= 2, "CE_DICE uses softmax channel 1; need C >= 2"
    HW = H * W

    logits2d = pmask.reshape(N, C, HW)                 # free reshape
    labels2d = rmask.reshape(N, HW)
    if not jnp.issubdtype(labels2d.dtype, jnp.integer):
        labels2d = labels2d.astype(jnp.int32)

    # Pixels live on the lane axis in groups of 128. Pad only when HW is not a
    # multiple of 128 (the kernel's flat-index mask makes pad values inert).
    R = pl.cdiv(HW, LANE)
    if HW % LANE:
        pad = R * LANE - HW
        logits2d = jnp.pad(logits2d, ((0, 0), (0, 0), (0, pad)))
        labels2d = jnp.pad(labels2d, ((0, 0), (0, pad)))
    logits = logits2d.reshape(N, C, R, LANE)           # free reshape
    labels = labels2d.reshape(N, R, LANE)

    rows = _pick_rows(C, R, logits.dtype.itemsize, labels.dtype.itemsize)
    acc_rows = 8 if rows % 8 == 0 else rows
    total_tiles = pl.cdiv(R, rows)

    # Feed both TensorCores on v7x even when N == 1 by splitting the pixel
    # tiles into an outer "parallel" chunk axis (only when it divides evenly).
    n_chunks = 2 if (N == 1 and total_tiles >= 2 and total_tiles % 2 == 0) else 1
    inner_tiles = total_tiles // n_chunks

    kernel = functools.partial(
        _ce_dice_kernel, hw=HW, rows=rows, c=C,
        inner_tiles=inner_tiles, acc_rows=acc_rows)

    logits_block = rows * LANE * C * logits.dtype.itemsize
    labels_block = rows * LANE * labels.dtype.itemsize
    interm = rows * LANE * 4 * (2 * C + 10)
    vmem_need = 2 * (logits_block + labels_block) + interm + (4 << 20)
    vmem_limit = int(min(max(vmem_need, 16 << 20),
                         int(0.85 * _vmem_capacity_bytes())))

    sums = pl.pallas_call(
        kernel,
        out_shape=jax.ShapeDtypeStruct((N, n_chunks, 4, acc_rows, LANE),
                                       jnp.float32),
        grid_spec=pltpu.PrefetchScalarGridSpec(
            num_scalar_prefetch=0,
            grid=(N, n_chunks, inner_tiles),
            in_specs=[
                # logits (N, C, R, 128) -> kernel sees (C, rows, 128)
                pl.BlockSpec((None, C, rows, LANE),
                             lambda n, ck, t, it=inner_tiles: (n, 0, ck * it + t, 0)),
                # labels (N, R, 128) -> kernel sees (rows, 128), lane-dense
                pl.BlockSpec((None, rows, LANE),
                             lambda n, ck, t, it=inner_tiles: (n, ck * it + t, 0)),
            ],
            # Lane-dense partial-sum slab, resident across the reduction axis.
            out_specs=pl.BlockSpec((None, None, 4, acc_rows, LANE),
                                   lambda n, ck, t: (n, ck, 0, 0, 0)),
        ),
        compiler_params=pltpu.CompilerParams(
            dimension_semantics=("parallel", "parallel", "arbitrary"),
            vmem_limit_bytes=vmem_limit),
    )(logits, labels)

    tot = jnp.sum(sums, axis=(0, 1, 3, 4))             # (4,) single host-side reduce
    ce_sum, inter, p1_sum, lab_sum = tot[0], tot[1], tot[2], tot[3]

    smooth = 1.0
    loss_ce = ce_sum / (N * HW)                        # CrossEntropyLoss(mean)
    loss_dice = 1.0 - (2.0 * inter + smooth) / (p1_sum + lab_sum + smooth)
    return loss_ce + loss_dice


def _reference(pmask, rmask):
    """Pure-JAX reference mirroring the PyTorch CE_DICE module."""
    N, C, H, W = pmask.shape
    logp = jax.nn.log_softmax(pmask, axis=1)
    onehot = jax.nn.one_hot(rmask, C, axis=1, dtype=jnp.float32)
    loss_ce = -jnp.sum(onehot * logp) / (N * H * W)
    p1 = jax.nn.softmax(pmask, axis=1)[:, 1]
    m1 = p1.reshape(N, -1)
    m2 = rmask.reshape(N, -1).astype(jnp.float32)
    inter = jnp.sum(m1 * m2)
    loss_dice = 1.0 - (2.0 * inter + 1.0) / (jnp.sum(m1) + jnp.sum(m2) + 1.0)
    return loss_ce + loss_dice


if __name__ == "__main__":
    key = jax.random.PRNGKey(0)
    k1, k2 = jax.random.split(key)
    N, C, H, W = 2, 4, 16, 16
    pmask = jax.random.normal(k1, (N, C, H, W), dtype=jnp.float32)
    rmask = jax.random.randint(k2, (N, H, W), 0, C, dtype=jnp.int32)

    loss = ce_dice_loss(pmask, rmask)
    jax.block_until_ready(loss)

    ref = _reference(pmask, rmask)
    # Tolerance covers the approx-reciprocal(+NR) path and reduction-order diffs.
    assert jnp.allclose(loss, ref, atol=1e-4, rtol=1e-4), (loss, ref)

    print("KERNEL_OK")
</pallas_src>

<mosaic_0001>
module attributes {stable_mosaic.version = 11 : i64} {
  func.func @_ce_dice_kernel(%arg0: i32, %arg1: i32, %arg2: i32, %arg3: memref<1x4x2x128xf32, #tpu.memory_space<vmem>>, %arg4: memref<1x2x128xi32, #tpu.memory_space<vmem>>, %arg5: memref<1x1x4x2x128xf32, #tpu.memory_space<vmem>>) attributes {dimension_semantics = [#tpu.dimension_semantics<parallel>, #tpu.dimension_semantics<parallel>, #tpu.dimension_semantics<arbitrary>], iteration_bounds = array<i64: 2, 1, 1>, scalar_prefetch = 0 : i64, scratch_operands = 0 : i64, tpu.core_type = #tpu.core_type<tc>, window_params = [{transform_indices = @transform_0, window_bounds = array<i64: 1, 4, 2, 128>}, {transform_indices = @transform_1, window_bounds = array<i64: 1, 2, 128>}, {transform_indices = @transform_2, window_bounds = array<i64: 1, 1, 4, 2, 128>}]} {
    %c0_i32 = arith.constant 0 : i32
    %0 = arith.cmpi eq, %arg2, %c0_i32 : i32
    %1 = arith.extui %0 : i1 to i32
    %c0_i32_0 = arith.constant 0 : i32
    %2 = arith.cmpi ne, %1, %c0_i32_0 : i32
    scf.if %2 {
      %cst_67 = arith.constant 0.000000e+00 : f32
      %106 = vector.broadcast %cst_67 : f32 to vector<4x2x128xf32>
      %c0_68 = arith.constant 0 : index
      %c0_69 = arith.constant 0 : index
      %c0_70 = arith.constant 0 : index
      %c0_71 = arith.constant 0 : index
      %c0_72 = arith.constant 0 : index
      %107 = vector.load %arg5[%c0_68, %c0_69, %c0_70, %c0_71, %c0_72] : memref<1x1x4x2x128xf32, #tpu.memory_space<vmem>>, vector<1x1x4x2x128xf32>
      %108 = vector.shape_cast %107 : vector<1x1x4x2x128xf32> to vector<4x2x128xf32>
      %109 = vector.shape_cast %106 : vector<4x2x128xf32> to vector<1x1x4x2x128xf32>
      tpu.vector_store %arg5[%c0_68, %c0_69, %c0_70, %c0_71, %c0_72], %109 {strides = array<i32>} : memref<1x1x4x2x128xf32, #tpu.memory_space<vmem>>, vector<1x1x4x2x128xf32>,
    } else {
    }
    %c1_i32 = arith.constant 1 : i32
    %3 = arith.muli %arg1, %c1_i32 : i32
    %4 = arith.addi %3, %arg2 : i32
    %5 = tpu.iota {dimensions = array<i32: 0>} : vector<2x128xi32>
    %6 = tpu.iota {dimensions = array<i32: 1>} : vector<2x128xi32>
    %c2_i32 = arith.constant 2 : i32
    %7 = arith.muli %4, %c2_i32 : i32
    %8 = vector.broadcast %7 : i32 to vector<2x128xi32>
    %9 = arith.addi %8, %5 : vector<2x128xi32>
    %c128_i32 = arith.constant 128 : i32
    %10 = vector.broadcast %c128_i32 : i32 to vector<2x128xi32>
    %11 = arith.muli %9, %10 : vector<2x128xi32>
    %12 = arith.addi %11, %6 : vector<2x128xi32>
    %c256_i32 = arith.constant 256 : i32
    %13 = vector.broadcast %c256_i32 : i32 to vector<2x128xi32>
    %14 = arith.cmpi slt, %12, %13 : vector<2x128xi32>
    %15 = arith.extui %14 : vector<2x128xi1> to vector<2x128xi32>
    %16 = arith.sitofp %15 : vector<2x128xi32> to vector<2x128xf32>
    %c0 = arith.constant 0 : index
    %c0_1 = arith.constant 0 : index
    %c0_2 = arith.constant 0 : index
    %c0_3 = arith.constant 0 : index
    %17 = vector.load %arg3[%c0, %c0_1, %c0_2, %c0_3] : memref<1x4x2x128xf32, #tpu.memory_space<vmem>>, vector<1x1x2x128xf32>
    %18 = vector.shape_cast %17 : vector<1x1x2x128xf32> to vector<2x128xf32>
    %cst = arith.constant 0.000000e+00 : f32
    %19 = vector.broadcast %cst : f32 to vector<2x128xf32>
    %20 = arith.select %14, %18, %19 : vector<2x128xi1>, vector<2x128xf32>
    %c0_4 = arith.constant 0 : index
    %c1 = arith.constant 1 : index
    %c0_5 = arith.constant 0 : index
    %c0_6 = arith.constant 0 : index
    %21 = vector.load %arg3[%c0_4, %c1, %c0_5, %c0_6] : memref<1x4x2x128xf32, #tpu.memory_space<vmem>>, vector<1x1x2x128xf32>
    %22 = vector.shape_cast %21 : vector<1x1x2x128xf32> to vector<2x128xf32>
    %cst_7 = arith.constant 0.000000e+00 : f32
    %23 = vector.broadcast %cst_7 : f32 to vector<2x128xf32>
    %24 = arith.select %14, %22, %23 : vector<2x128xi1>, vector<2x128xf32>
    %c0_8 = arith.constant 0 : index
    %c2 = arith.constant 2 : index
    %c0_9 = arith.constant 0 : index
    %c0_10 = arith.constant 0 : index
    %25 = vector.load %arg3[%c0_8, %c2, %c0_9, %c0_10] : memref<1x4x2x128xf32, #tpu.memory_space<vmem>>, vector<1x1x2x128xf32>
    %26 = vector.shape_cast %25 : vector<1x1x2x128xf32> to vector<2x128xf32>
    %cst_11 = arith.constant 0.000000e+00 : f32
    %27 = vector.broadcast %cst_11 : f32 to vector<2x128xf32>
    %28 = arith.select %14, %26, %27 : vector<2x128xi1>, vector<2x128xf32>
    %c0_12 = arith.constant 0 : index
    %c3 = arith.constant 3 : index
    %c0_13 = arith.constant 0 : index
    %c0_14 = arith.constant 0 : index
    %29 = vector.load %arg3[%c0_12, %c3, %c0_13, %c0_14] : memref<1x4x2x128xf32, #tpu.memory_space<vmem>>, vector<1x1x2x128xf32>
    %30 = vector.shape_cast %29 : vector<1x1x2x128xf32> to vector<2x128xf32>
    %cst_15 = arith.constant 0.000000e+00 : f32
    %31 = vector.broadcast %cst_15 : f32 to vector<2x128xf32>
    %32 = arith.select %14, %30, %31 : vector<2x128xi1>, vector<2x128xf32>
    %33 = arith.maximumf %20, %24 : vector<2x128xf32>
    %34 = arith.maximumf %33, %28 : vector<2x128xf32>
    %35 = arith.maximumf %34, %32 : vector<2x128xf32>
    %36 = arith.subf %20, %35 : vector<2x128xf32>
    %37 = math.exp %36 : vector<2x128xf32>
    %38 = arith.subf %24, %35 : vector<2x128xf32>
    %39 = math.exp %38 : vector<2x128xf32>
    %40 = arith.subf %28, %35 : vector<2x128xf32>
    %41 = math.exp %40 : vector<2x128xf32>
    %42 = arith.subf %32, %35 : vector<2x128xf32>
    %43 = math.exp %42 : vector<2x128xf32>
    %44 = arith.addf %37, %39 : vector<2x128xf32>
    %45 = arith.addf %44, %41 : vector<2x128xf32>
    %46 = arith.addf %45, %43 : vector<2x128xf32>
    %47 = math.log %46 : vector<2x128xf32>
    %48 = arith.addf %47, %35 : vector<2x128xf32>
    %49 = tpu.reciprocal %46 {approx = true} : vector<2x128xf32> -> vector<2x128xf32>
    %50 = arith.mulf %46, %49 : vector<2x128xf32>
    %cst_16 = arith.constant 2.000000e+00 : f32
    %51 = vector.broadcast %cst_16 : f32 to vector<2x128xf32>
    %52 = arith.subf %51, %50 : vector<2x128xf32>
    %53 = arith.mulf %49, %52 : vector<2x128xf32>
    %c0_17 = arith.constant 0 : index
    %c0_18 = arith.constant 0 : index
    %c0_19 = arith.constant 0 : index
    %54 = vector.load %arg4[%c0_17, %c0_18, %c0_19] : memref<1x2x128xi32, #tpu.memory_space<vmem>>, vector<1x2x128xi32>
    %55 = vector.shape_cast %54 : vector<1x2x128xi32> to vector<2x128xi32>
    %c0_i32_20 = arith.constant 0 : i32
    %56 = vector.broadcast %c0_i32_20 : i32 to vector<2x128xi32>
    %57 = arith.cmpi eq, %55, %56 : vector<2x128xi32>
    %cst_21 = arith.constant 0.000000e+00 : f32
    %58 = vector.broadcast %cst_21 : f32 to vector<2x128xf32>
    %59 = arith.select %57, %20, %58 : vector<2x128xi1>, vector<2x128xf32>
    %c1_i32_22 = arith.constant 1 : i32
    %60 = vector.broadcast %c1_i32_22 : i32 to vector<2x128xi32>
    %61 = arith.cmpi eq, %55, %60 : vector<2x128xi32>
    %cst_23 = arith.constant 0.000000e+00 : f32
    %62 = vector.broadcast %cst_23 : f32 to vector<2x128xf32>
    %63 = arith.select %61, %24, %62 : vector<2x128xi1>, vector<2x128xf32>
    %64 = arith.addf %59, %63 : vector<2x128xf32>
    %c2_i32_24 = arith.constant 2 : i32
    %65 = vector.broadcast %c2_i32_24 : i32 to vector<2x128xi32>
    %66 = arith.cmpi eq, %55, %65 : vector<2x128xi32>
    %cst_25 = arith.constant 0.000000e+00 : f32
    %67 = vector.broadcast %cst_25 : f32 to vector<2x128xf32>
    %68 = arith.select %66, %28, %67 : vector<2x128xi1>, vector<2x128xf32>
    %69 = arith.addf %64, %68 : vector<2x128xf32>
    %c3_i32 = arith.constant 3 : i32
    %70 = vector.broadcast %c3_i32 : i32 to vector<2x128xi32>
    %71 = arith.cmpi eq, %55, %70 : vector<2x128xi32>
    %cst_26 = arith.constant 0.000000e+00 : f32
    %72 = vector.broadcast %cst_26 : f32 to vector<2x128xf32>
    %73 = arith.select %71, %32, %72 : vector<2x128xi1>, vector<2x128xf32>
    %74 = arith.addf %69, %73 : vector<2x128xf32>
    %75 = arith.subf %48, %74 : vector<2x128xf32>
    %76 = arith.mulf %75, %16 : vector<2x128xf32>
    %77 = arith.mulf %39, %53 : vector<2x128xf32>
    %78 = arith.mulf %77, %16 : vector<2x128xf32>
    %79 = arith.sitofp %55 : vector<2x128xi32> to vector<2x128xf32>
    %80 = arith.mulf %79, %16 : vector<2x128xf32>
    %c0_27 = arith.constant 0 : index
    %c0_28 = arith.constant 0 : index
    %c0_29 = arith.constant 0 : index
    %c0_30 = arith.constant 0 : index
    %c0_31 = arith.constant 0 : index
    %81 = vector.load %arg5[%c0_27, %c0_28, %c0_29, %c0_30, %c0_31] : memref<1x1x4x2x128xf32, #tpu.memory_space<vmem>>, vector<1x1x1x2x128xf32>
    %82 = vector.shape_cast %81 : vector<1x1x1x2x128xf32> to vector<2x128xf32>
    %83 = arith.addf %82, %76 : vector<2x128xf32>
    %c0_32 = arith.constant 0 : index
    %c0_33 = arith.constant 0 : index
    %c0_34 = arith.constant 0 : index
    %c0_35 = arith.constant 0 : index
    %c0_36 = arith.constant 0 : index
    %84 = vector.load %arg5[%c0_32, %c0_33, %c0_34, %c0_35, %c0_36] : memref<1x1x4x2x128xf32, #tpu.memory_space<vmem>>, vector<1x1x1x2x128xf32>
    %85 = vector.shape_cast %84 : vector<1x1x1x2x128xf32> to vector<2x128xf32>
    %86 = vector.shape_cast %83 : vector<2x128xf32> to vector<1x1x1x2x128xf32>
    tpu.vector_store %arg5[%c0_32, %c0_33, %c0_34, %c0_35, %c0_36], %86 {strides = array<i32>} : memref<1x1x4x2x128xf32, #tpu.memory_space<vmem>>, vector<1x1x1x2x128xf32>,
    %c0_37 = arith.constant 0 : index
    %c0_38 = arith.constant 0 : index
    %c1_39 = arith.constant 1 : index
    %c0_40 = arith.constant 0 : index
    %c0_41 = arith.constant 0 : index
    %87 = vector.load %arg5[%c0_37, %c0_38, %c1_39, %c0_40, %c0_41] : memref<1x1x4x2x128xf32, #tpu.memory_space<vmem>>, vector<1x1x1x2x128xf32>
    %88 = vector.shape_cast %87 : vector<1x1x1x2x128xf32> to vector<2x128xf32>
    %89 = arith.mulf %78, %80 : vector<2x128xf32>
    %90 = arith.addf %88, %89 : vector<2x128xf32>
    %c0_42 = arith.constant 0 : index
    %c0_43 = arith.constant 0 : index
    %c1_44 = arith.constant 1 : index
    %c0_45 = arith.constant 0 : index
    %c0_46 = arith.constant 0 : index
    %91 = vector.load %arg5[%c0_42, %c0_43, %c1_44, %c0_45, %c0_46] : memref<1x1x4x2x128xf32, #tpu.memory_space<vmem>>, vector<1x1x1x2x128xf32>
    %92 = vector.shape_cast %91 : vector<1x1x1x2x128xf32> to vector<2x128xf32>
    %93 = vector.shape_cast %90 : vector<2x128xf32> to vector<1x1x1x2x128xf32>
    tpu.vector_store %arg5[%c0_42, %c0_43, %c1_44, %c0_45, %c0_46], %93 {strides = array<i32>} : memref<1x1x4x2x128xf32, #tpu.memory_space<vmem>>, vector<1x1x1x2x128xf32>,
    %c0_47 = arith.constant 0 : index
    %c0_48 = arith.constant 0 : index
    %c2_49 = arith.constant 2 : index
    %c0_50 = arith.constant 0 : index
    %c0_51 = arith.constant 0 : index
    %94 = vector.load %arg5[%c0_47, %c0_48, %c2_49, %c0_50, %c0_51] : memref<1x1x4x2x128xf32, #tpu.memory_space<vmem>>, vector<1x1x1x2x128xf32>
    %95 = vector.shape_cast %94 : vector<1x1x1x2x128xf32> to vector<2x128xf32>
    %96 = arith.addf %95, %78 : vector<2x128xf32>
    %c0_52 = arith.constant 0 : index
    %c0_53 = arith.constant 0 : index
    %c2_54 = arith.constant 2 : index
    %c0_55 = arith.constant 0 : index
    %c0_56 = arith.constant 0 : index
    %97 = vector.load %arg5[%c0_52, %c0_53, %c2_54, %c0_55, %c0_56] : memref<1x1x4x2x128xf32, #tpu.memory_space<vmem>>, vector<1x1x1x2x128xf32>
    %98 = vector.shape_cast %97 : vector<1x1x1x2x128xf32> to vector<2x128xf32>
    %99 = vector.shape_cast %96 : vector<2x128xf32> to vector<1x1x1x2x128xf32>
    tpu.vector_store %arg5[%c0_52, %c0_53, %c2_54, %c0_55, %c0_56], %99 {strides = array<i32>} : memref<1x1x4x2x128xf32, #tpu.memory_space<vmem>>, vector<1x1x1x2x128xf32>,
    %c0_57 = arith.constant 0 : index
    %c0_58 = arith.constant 0 : index
    %c3_59 = arith.constant 3 : index
    %c0_60 = arith.constant 0 : index
    %c0_61 = arith.constant 0 : index
    %100 = vector.load %arg5[%c0_57, %c0_58, %c3_59, %c0_60, %c0_61] : memref<1x1x4x2x128xf32, #tpu.memory_space<vmem>>, vector<1x1x1x2x128xf32>
    %101 = vector.shape_cast %100 : vector<1x1x1x2x128xf32> to vector<2x128xf32>
    %102 = arith.addf %101, %80 : vector<2x128xf32>
    %c0_62 = arith.constant 0 : index
    %c0_63 = arith.constant 0 : index
    %c3_64 = arith.constant 3 : index
    %c0_65 = arith.constant 0 : index
    %c0_66 = arith.constant 0 : index
    %103 = vector.load %arg5[%c0_62, %c0_63, %c3_64, %c0_65, %c0_66] : memref<1x1x4x2x128xf32, #tpu.memory_space<vmem>>, vector<1x1x1x2x128xf32>
    %104 = vector.shape_cast %103 : vector<1x1x1x2x128xf32> to vector<2x128xf32>
    %105 = vector.shape_cast %102 : vector<2x128xf32> to vector<1x1x1x2x128xf32>
    tpu.vector_store %arg5[%c0_62, %c0_63, %c3_64, %c0_65, %c0_66], %105 {strides = array<i32>} : memref<1x1x4x2x128xf32, #tpu.memory_space<vmem>>, vector<1x1x1x2x128xf32>,
    return
  }
  func.func @transform_0(%arg0: i32, %arg1: i32, %arg2: i32) -> (i32, i32, i32, i32) {
    %c1_i32 = arith.constant 1 : i32
    %0 = arith.muli %arg1, %c1_i32 : i32
    %1 = arith.addi %0, %arg2 : i32
    %c0_i32 = arith.constant 0 : i32
    %c0_i32_0 = arith.constant 0 : i32
    %c0_i32_1 = arith.constant 0 : i32
    return %arg0, %c0_i32, %1, %c0_i32_0 : i32, i32, i32, i32
  }
  func.func @transform_1(%arg0: i32, %arg1: i32, %arg2: i32) -> (i32, i32, i32) {
    %c1_i32 = arith.constant 1 : i32
    %0 = arith.muli %arg1, %c1_i32 : i32
    %1 = arith.addi %0, %arg2 : i32
    %c0_i32 = arith.constant 0 : i32
    %c0_i32_0 = arith.constant 0 : i32
    return %arg0, %1, %c0_i32 : i32, i32, i32
  }
  func.func @transform_2(%arg0: i32, %arg1: i32, %arg2: i32) -> (i32, i32, i32, i32, i32) {
    %c0_i32 = arith.constant 0 : i32
    %c0_i32_0 = arith.constant 0 : i32
    %c0_i32_1 = arith.constant 0 : i32
    %c0_i32_2 = arith.constant 0 : i32
    return %arg0, %arg1, %c0_i32, %c0_i32_0, %c0_i32_1 : i32, i32, i32, i32, i32
  }
}

</mosaic_0001>

<llo_original>
// kernel: ce_dice_loss.1
$region0: #{ce_dice_loss.1}
  #allocation0 [shape = 'u32[]', space=smem, size = 0x4, offset = 0x4, fixed_abs, tag = 'smem constant byte address 0x4 - core index']
  #allocation1 [shape = 'u32[144,128]{1,0:T(1,128)}', space=vmem, size = 0x12000, scoped, tag = 'internal scratch']
  %s0 = inlined_call_operand.vmem [shape: f32[2,4,2,128], index: 0, kind: input, shape index: {}]
  %s1 = inlined_call_operand.vmem [shape: s32[2,2,128], index: 1, kind: input, shape index: {}]
  %s2 = inlined_call_operand.vmem [shape: f32[2,1,4,2,128], index: 2, kind: output, shape index: {}]
  %s3 = sld [smem:[#allocation0]]
  $region45: #{ce_dice_loss.1} parent=0
    _
  %s5 = ssub.s32 1, %s3
  %s6 = scalar_select 0, %s5, %s3
  loop: start=0, step=1, limit=4
  $region2: #{ce_dice_loss.1} parent=0 // loop_pre_header
    _
  $region3: #{ce_dice_loss.1} parent=0 // loop_header
    %s8 = sphi 0, %s12
    %p9 = scmp.ge.s32.totalorder %s8, 4
    %s15 = sphi 0, %s34
    %s16 = sphi 0, %s30
    %s17 = sphi 0, %s26
    %s18 = sphi 0, %s15
    %s19 = sphi 0, %s16
    %s20 = sphi 0, %s17
    %s21 = sphi 0, %s18
    %s22 = sphi 0, %s19
    %s23 = sphi 0, %s20
    %s41 = sphi 0, %s43
    %s44 = sphi 0, %s41
    %s45 = sphi 0, %s44
    %s61 = sphi 0, %s45
    %s71 = sphi 0, %s73
    %s74 = sphi 0, %s71
    %s75 = sphi 0, %s74
    %s91 = sphi 0, %s75
    %s99 = sphi 0, %s101
    %s102 = sphi 0, %s99
    %s103 = sphi 0, %s102
    %s119 = sphi 0, %s103
  $region4: #{ce_dice_loss.1} parent=0 // loop_header_branch
    %11 = sbr.rel (%p9) target = $region8
  $region5: #{ce_dice_loss.1} parent=0 // loop_body
    %s13 = ssub.s32 %s8, 1
    %s14 = ssub.s32 %s8, 2
    %s24 = sadd.s32 1, %s17
    %p25 = scmp.ge.s32.totalorder %s24, 1
    %s26 = scalar_select %p25, 0, %s24
    %s27 = sadd.s32 1, %s16
    %s28 = scalar_select %p25, %s27, %s16
    %p29 = scmp.ge.s32.totalorder %s28, 1
    %s30 = scalar_select %p29, 0, %s28
    %s31 = sadd.s32 1, %s15
    %s32 = scalar_select %p29, %s31, %s15
    %p33 = scmp.ge.s32.totalorder %s32, 2
    %s34 = scalar_select %p33, 0, %s32
    %s35 = sadd.s32 %s16, %s17
    %s36 = sadd.s32 %s30, %s26
    %s37 = ssub.s32 %s15, %s34
    %s38 = ssub.s32 %s35, %s36
    %s39 = sor.u32 %s37, %s38
    %p40 = scmp.eq.s32.totalorder %s39, 0
    %s42 = sadd.s32 %s41, 1
    %s43 = scalar_select %p40, %s41, %s42
    %p46 = pneg %p40
    %p47 = scmp.eq.s32.totalorder %s8, 1
    %p48 = por %p46, %p47
    %p49 = scmp.ne.s32.totalorder %s41, %s44
    %p50 = scmp.eq.s32.totalorder %s8, 0
    %p51 = por %p49, %p50
    %p52 = scmp.ne.s32.totalorder %s41, %s44
    %p53 = scmp.eq.s32.totalorder %s13, 1
    %p54 = por %p52, %p53
    %p55 = scmp.ne.s32.totalorder %s44, %s45
    %p56 = scmp.eq.s32.totalorder %s13, 0
    %p57 = por %p55, %p56
    %p58 = scmp.ne.s32.totalorder %s44, %s45
    %p59 = scmp.eq.s32.totalorder %s14, 1
    %p60 = por %p58, %p59
    %p62 = scmp.ne.s32.totalorder %s45, %s61
    %p63 = scmp.eq.s32.totalorder %s14, 0
    %p64 = por %p62, %p63
    %s65 = sadd.s32 %s16, %s17
    %s66 = sadd.s32 %s30, %s26
    %s67 = ssub.s32 %s15, %s34
    %s68 = ssub.s32 %s65, %s66
    %s69 = sor.u32 %s67, %s68
    %p70 = scmp.eq.s32.totalorder %s69, 0
    %s72 = sadd.s32 %s71, 1
    %s73 = scalar_select %p70, %s71, %s72
    %p76 = pneg %p70
    %p77 = scmp.eq.s32.totalorder %s8, 1
    %p78 = por %p76, %p77
    %p79 = scmp.ne.s32.totalorder %s71, %s74
    %p80 = scmp.eq.s32.totalorder %s8, 0
    %p81 = por %p79, %p80
    %p82 = scmp.ne.s32.totalorder %s71, %s74
    %p83 = scmp.eq.s32.totalorder %s13, 1
    %p84 = por %p82, %p83
    %p85 = scmp.ne.s32.totalorder %s74, %s75
    %p86 = scmp.eq.s32.totalorder %s13, 0
    %p87 = por %p85, %p86
    %p88 = scmp.ne.s32.totalorder %s74, %s75
    %p89 = scmp.eq.s32.totalorder %s14, 1
    %p90 = por %p88, %p89
    %p92 = scmp.ne.s32.totalorder %s75, %s91
    %p93 = scmp.eq.s32.totalorder %s14, 0
    %p94 = por %p92, %p93
    %s95 = ssub.s32 %s15, %s34
    %s96 = ssub.s32 %s16, %s30
    %s97 = sor.u32 %s95, %s96
    %p98 = scmp.eq.s32.totalorder %s97, 0
    %s100 = sadd.s32 %s99, 1
    %s101 = scalar_select %p98, %s99, %s100
    %p104 = pneg %p98
    %p105 = scmp.eq.s32.totalorder %s8, 1
    %p106 = por %p104, %p105
    %p107 = scmp.ne.s32.totalorder %s99, %s102
    %p108 = scmp.eq.s32.totalorder %s8, 0
    %p109 = por %p107, %p108
    %p110 = scmp.ne.s32.totalorder %s99, %s102
    %p111 = scmp.eq.s32.totalorder %s13, 1
    %p112 = por %p110, %p111
    %p113 = scmp.ne.s32.totalorder %s102, %s103
    %p114 = scmp.eq.s32.totalorder %s13, 0
    %p115 = por %p113, %p114
    %p116 = scmp.ne.s32.totalorder %s102, %s103
    %p117 = scmp.eq.s32.totalorder %s14, 1
    %p118 = por %p116, %p117
    %p120 = scmp.ne.s32.totalorder %s103, %s119
    %p121 = scmp.eq.s32.totalorder %s14, 0
    %p122 = por %p120, %p121
    %p123 = scmp.le.s32.totalorder 1, %s8
    %p124 = scmp.lt.s32.totalorder %s8, 3
    %p125 = pnand %p123, %p124
    %p126 = pneg %p125
    // Predicated region
    $region9: #{ce_dice_loss.1} parent=5 // pred_check
      _
    $region10: #{ce_dice_loss.1} parent=5 // pred_check_branch
      %128 = sbr.rel (%p125) target = $region12
    $region11: #{ce_dice_loss.1} parent=5 // pred_region
      %s129 = ssub.s32 %s8, 1
    $region12: #{ce_dice_loss.1} parent=5 // pred_fallthru
      _
    %p130 = scmp.lt.s32.totalorder %s8, 2
    // Predicated region
    $region13: #{ce_dice_loss.1} parent=5 // pred_check
      %p131 = pneg %p130
    $region14: #{ce_dice_loss.1} parent=5 // pred_check_branch
      %133 = sbr.rel (%p131) target = $region16
    $region15: #{ce_dice_loss.1} parent=5 // pred_region
      // Predicated region
      $region17: #{ce_dice_loss.1} parent=15 // pred_check
        %p134 = pneg %p51
      $region18: #{ce_dice_loss.1} parent=15 // pred_check_branch
        %136 = sbr.rel (%p134) target = $region20
      $region19: #{ce_dice_loss.1} parent=15 // pred_region
        %s137 = sadd.s32 %s16, %s17
        %p138 = scmp.lt.s32.totalorder %s15, 1
        %s139 = scalar_select %p138, %s15, 1
        %p140 = scmp.lt.s32.totalorder %s137, 0
        %s141 = scalar_select %p140, %s137, 0
        %s142 = smul.addr %s139, 4
        %s143 = sadd.s32 %s141, %s142
        %s144 = smul.addr %s143, 2
        %s145 = scalar_lea.vmem %s0, %s144
        %s146 = sadd.s32 %s16, %s17
      $region20: #{ce_dice_loss.1} parent=15 // pred_fallthru
        _
      // Predicated region
      $region21: #{ce_dice_loss.1} parent=15 // pred_check
        %p147 = pneg %p81
      $region22: #{ce_dice_loss.1} parent=15 // pred_check_branch
        %149 = sbr.rel (%p147) target = $region24
      $region23: #{ce_dice_loss.1} parent=15 // pred_region
        %s150 = sadd.s32 %s16, %s17
        %p151 = scmp.lt.s32.totalorder %s15, 1
        %s152 = scalar_select %p151, %s15, 1
        %p153 = scmp.lt.s32.totalorder %s150, 0
        %s154 = scalar_select %p153, %s150, 0
        %s155 = sadd.s32 %s154, %s152
        %s156 = smul.addr %s155, 2
        %s157 = scalar_lea.vmem %s1, %s156
        %s158 = sadd.s32 %s16, %s17
      $region24: #{ce_dice_loss.1} parent=15 // pred_fallthru
        _
    $region16: #{ce_dice_loss.1} parent=5 // pred_fallthru
      _
    %p159 = scmp.le.s32.totalorder 1, %s8
    %p160 = scmp.lt.s32.totalorder %s8, 3
    %p161 = pnand %p159, %p160
    %p162 = pneg %p161
    // Predicated region
    $region25: #{ce_dice_loss.1} parent=5 // pred_check
      _
    $region26: #{ce_dice_loss.1} parent=5 // pred_check_branch
      %164 = sbr.rel (%p161) target = $region28
    $region27: #{ce_dice_loss.1} parent=5 // pred_region
      %s165 = ssub.s32 %s8, 1
      %s166 = sadd.s32 %s19, %s20
      %p167 = scmp.lt.s32.totalorder %s18, 1
      %s168 = scalar_select %p167, %s18, 1
      %p169 = scmp.lt.s32.totalorder %s166, 0
      %s170 = scalar_select %p169, %s166, 0
      %s171 = smul.addr %s168, 4
      %s172 = sadd.s32 %s170, %s171
      %s173 = smul.addr %s172, 2
      %s174 = scalar_lea.vmem %s0, %s173
      %p175 = pneg %p57
      %p176 = pneg %p54
      %s177 = sadd.s32 %s19, %s20
      %p178 = scmp.lt.s32.totalorder %s18, 1
      %s179 = scalar_select %p178, %s18, 1
      %p180 = scmp.lt.s32.totalorder %s177, 0
      %s181 = scalar_select %p180, %s177, 0
      %s182 = sadd.s32 %s181, %s179
      %s183 = smul.addr %s182, 2
      %s184 = scalar_lea.vmem %s1, %s183
      %p185 = pneg %p87
      %p186 = pneg %p84
      %p187 = pneg %p115
      %p188 = pneg %p112
      %p189 = scmp.lt.s32.totalorder %s18, 1
      %s190 = scalar_select %p189, %s18, 1
      %p191 = scmp.lt.s32.totalorder %s19, 0
      %s192 = scalar_select %p191, %s19, 0
      %s193 = smul.addr %s192, 4
      %s194 = smul.addr %s190, 4
      %s195 = sadd.s32 %s193, %s194
      %s196 = smul.addr %s195, 2
      %s197 = scalar_lea.vmem %s2, %s196
      %s198 = sadd.s32 %s19, %s20
      %p199 = scmp.lt.s32.totalorder %s18, 1
      %s200 = scalar_select %p199, %s18, 1
      %p201 = scmp.lt.s32.totalorder %s198, 0
      %s202 = scalar_select %p201, %s198, 0
      %s203 = smul.addr %s200, 4
      %s204 = sadd.s32 %s202, %s203
      %s205 = smul.addr %s204, 2
      %s206 = scalar_lea.vmem %s0, %s205
      %s207 = sadd.s32 %s19, %s20
      %s208 = sadd.s32 %s19, %s20
      %p209 = scmp.lt.s32.totalorder %s18, 1
      %s210 = scalar_select %p209, %s18, 1
      %p211 = scmp.lt.s32.totalorder %s208, 0
      %s212 = scalar_select %p211, %s208, 0
      %s213 = sadd.s32 %s212, %s210
      %s214 = smul.addr %s213, 2
      %s215 = scalar_lea.vmem %s1, %s214
      %s216 = sadd.s32 %s19, %s20
      %p217 = scmp.lt.s32.totalorder %s18, 1
      %s218 = scalar_select %p217, %s18, 1
      %p219 = scmp.lt.s32.totalorder %s19, 0
      %s220 = scalar_select %p219, %s19, 0
      %s221 = smul.addr %s220, 4
      %s222 = smul.addr %s218, 4
      %s223 = sadd.s32 %s221, %s222
      %s224 = smul.addr %s223, 2
      %s225 = scalar_lea.vmem %s2, %s224
      %p226 = scmp.eq.s32.totalorder %s20, 0
      // Predicated region
      $region29: #{ce_dice_loss.1} parent=27 // pred_check
        %p227 = pneg %p226
      $region30: #{ce_dice_loss.1} parent=27 // pred_check_branch
        %229 = sbr.rel (%p227) target = $region32
      $region31: #{ce_dice_loss.1} parent=27 // pred_region
        %230 = vst [vmem:[%s225] sm:$0x3] 0.0
        %231 = vst [vmem:[%s225 + $0x2] sm:$0x3] 0.0
        %232 = vst [vmem:[%s225 + $0x4] sm:$0x3] 0.0
        %233 = vst [vmem:[%s225 + $0x6] sm:$0x3] 0.0
      $region32: #{ce_dice_loss.1} parent=27 // pred_fallthru
        _
      %s234 = sadd.s32 %s19, %s20
      %v235 = vlaneseq
      %v236 = vshrl.u32 %v235, 7
      %v237 = vlaneseq
      %v238 = vand.u32 %v237, 127
      %s239 = smul.u32 %s234, 2
      %v240 = vstv %s239
      %v241 = vadd.s32 %v240, %v236
      %v242 = vmul.u32 %v241, 128
      %v243 = vadd.s32 %v242, %v238
      %vm244 = vcmp.lt.s32.totalorder %v243, 256
      %v245 = vsel %vm244, 1, 0
      %v246 = vcvt.s32.f32 %v245
      %v247 = vld [vmem:[%s206] sm:$0x3]
      %v248 = vsel %vm244, %v247, 0.0
      %s249 = scalar_lea.vmem %s206, 2
      %v250 = vld [vmem:[%s249] sm:$0x3]
      %v251 = vsel %vm244, %v250, 0.0
      %s252 = scalar_lea.vmem %s206, 4
      %v253 = vld [vmem:[%s252] sm:$0x3]
      %v254 = vsel %vm244, %v253, 0.0
      %s255 = scalar_lea.vmem %s206, 6
      %v256 = vld [vmem:[%s255] sm:$0x3]
      %v257 = vsel %vm244, %v256, 0.0
      %v258 = vmax.f32 %v248, %v251
      %v259 = vmax.f32 %v258, %v254
      %v260 = vmax.f32 %v259, %v257
      %v261 = vsub.f32 %v248, %v260
      %v262 = vmul.f32 %v261, 1.442695
      %v263 = vpow.pop %v262
      %v264 = vsub.f32 %v251, %v260
      %v265 = vmul.f32 %v264, 1.442695
      %v266 = vpow.pop %v265
      %v267 = vsub.f32 %v254, %v260
      %v268 = vmul.f32 %v267, 1.442695
      %v269 = vpow.pop %v268
      %v270 = vsub.f32 %v257, %v260
      %v271 = vmul.f32 %v270, 1.442695
      %v272 = vpow.pop %v271
      %v273 = vadd.f32 %v263, %v266
      %v274 = vadd.f32 %v273, %v269
      %v275 = vadd.f32 %v274, %v272
      %v276 = vlog2.pop %v275
      %v277 = vmul.f32 %v276, 0.6931472
      %v278 = vadd.f32 %v277, %v260
      %v279 = vrcp.pop %v275
      %v280 = vmul.f32 %v275, %v279
      %v281 = vsub.f32 2.0, %v280
      %v282 = vmul.f32 %v279, %v281
      %v283 = vld [vmem:[%s215] sm:$0x3]
      %vm284 = vcmp.eq.s32.totalorder %v283, 0
      %v285 = vsel %vm284, %v248, 0.0
      %vm286 = vcmp.eq.s32.totalorder %v283, 1
      %v287 = vsel %vm286, %v251, 0.0
      %v288 = vadd.f32 %v285, %v287
      %vm289 = vcmp.eq.s32.totalorder %v283, 2
      %v290 = vsel %vm289, %v254, 0.0
      %v291 = vadd.f32 %v288, %v290
      %vm292 = vcmp.eq.s32.totalorder %v283, 3
      %v293 = vsel %vm292, %v257, 0.0
      %v294 = vadd.f32 %v291, %v293
      %v295 = vsub.f32 %v278, %v294
      %v296 = vmul.f32 %v295, %v246
      %v297 = vmul.f32 %v266, %v282
      %v298 = vmul.f32 %v297, %v246
      %v299 = vcvt.s32.f32 %v283
      %v300 = vmul.f32 %v299, %v246
      %v301 = vld [vmem:[%s225] sm:$0x3]
      %v302 = vadd.f32 %v301, %v296
      %303 = vst [vmem:[%s225] sm:$0x3] %v302
      %s304 = scalar_lea.vmem %s225, 2
      %v305 = vld [vmem:[%s304] sm:$0x3]
      %v306 = vmul.f32 %v298, %v300
      %v307 = vadd.f32 %v305, %v306
      %308 = vst [vmem:[%s304] sm:$0x3] %v307
      %s309 = scalar_lea.vmem %s225, 4
      %v310 = vld [vmem:[%s309] sm:$0x3]
      %v311 = vadd.f32 %v310, %v298
      %312 = vst [vmem:[%s309] sm:$0x3] %v311
      %s313 = scalar_lea.vmem %s225, 6
      %v314 = vld [vmem:[%s313] sm:$0x3]
      %v315 = vadd.f32 %v314, %v300
      %316 = vst [vmem:[%s313] sm:$0x3] %v315
      %p317 = scmp.lt.s32.totalorder %s18, 1
      %s318 = scalar_select %p317, %s18, 1
      %p319 = scmp.lt.s32.totalorder %s19, 0
      %s320 = scalar_select %p319, %s19, 0
      %s321 = smul.addr %s320, 4
      %s322 = smul.addr %s318, 4
      %s323 = sadd.s32 %s321, %s322
      %s324 = smul.addr %s323, 2
      %s325 = scalar_lea.vmem %s2, %s324
      // Predicated region
      $region33: #{ce_dice_loss.1} parent=27 // pred_check
        %p326 = pneg %p112
      $region34: #{ce_dice_loss.1} parent=27 // pred_check_branch
        %328 = sbr.rel (%p326) target = $region36
      $region35: #{ce_dice_loss.1} parent=27 // pred_region
        _
      $region36: #{ce_dice_loss.1} parent=27 // pred_fallthru
        _
    $region28: #{ce_dice_loss.1} parent=5 // pred_fallthru
      _
    %p329 = scmp.le.s32.totalorder 2, %s8
    // Predicated region
    $region37: #{ce_dice_loss.1} parent=5 // pred_check
      %p330 = pneg %p329
    $region38: #{ce_dice_loss.1} parent=5 // pred_check_branch
      %332 = sbr.rel (%p330) target = $region40
    $region39: #{ce_dice_loss.1} parent=5 // pred_region
      %s333 = ssub.s32 %s8, 2
      // Predicated region
      $region41: #{ce_dice_loss.1} parent=39 // pred_check
        %p334 = pneg %p118
      $region42: #{ce_dice_loss.1} parent=39 // pred_check_branch
        %336 = sbr.rel (%p334) target = $region44
      $region43: #{ce_dice_loss.1} parent=39 // pred_region
        %p337 = scmp.lt.s32.totalorder %s21, 1
        %s338 = scalar_select %p337, %s21, 1
        %p339 = scmp.lt.s32.totalorder %s22, 0
        %s340 = scalar_select %p339, %s22, 0
        %s341 = smul.addr %s340, 4
        %s342 = smul.addr %s338, 4
        %s343 = sadd.s32 %s341, %s342
        %s344 = smul.addr %s343, 2
        %s345 = scalar_lea.vmem %s2, %s344
      $region44: #{ce_dice_loss.1} parent=39 // pred_fallthru
        _
    $region40: #{ce_dice_loss.1} parent=5 // pred_fallthru
      _
  $region6: #{ce_dice_loss.1} parent=0 // loop_footer
    %s12 = sadd.s32 1, %s8
  $region7: #{ce_dice_loss.1} parent=0 // loop_footer_branch
    %7 = sbr.rel target = $region3
  $region8: #{ce_dice_loss.1} parent=0 // loop_exit
    _

</llo_original>
